<compile_context>
chip_gen: v5e
topology: v5e:2x2
jax: 0.10.0
libtpu: 0.0.40
codegen_flags: <defaults>
</compile_context>

<pallas_src>
import functools

import jax
import jax.numpy as jnp
from jax.experimental import pallas as pl
from jax.experimental.pallas import tpu as pltpu

_EPS = 1e-5
_VMEM_LIMIT = 48 * 1024 * 1024   # comfortably under v7x's 64 MiB physical VMEM


# ----------------------------- Pallas kernels ------------------------------ #

def _bn_scale_shift(z, gamma_row, beta_row, count, eps):
    """Exact training-mode BN scale/shift from a VMEM-resident activation.

    z: (R, C) f32, gamma/beta: (1, C) f32, count: python float (= R).
    """
    inv_n = 1.0 / count
    ssum = jnp.sum(z, axis=0, keepdims=True)            # (1, C)  cross-sublane reduce
    ssq = jnp.sum(z * z, axis=0, keepdims=True)         # (1, C)
    mean = ssum * inv_n
    var = jnp.maximum(ssq * inv_n - mean * mean, 0.0)    # biased var (PyTorch training)
    scale = gamma_row * jax.lax.rsqrt(var + eps)          # EUP rsqrt
    shift = beta_row - mean * scale
    return scale, shift


def _stage1_kernel(p1_ref, w1_ref, g1_ref, b1_ref, y1_ref, *, count, eps):
    """conv1 (im2col dot) + BN1 (stats + affine) + ReLU, all in VMEM."""
    z = jnp.dot(p1_ref[...], w1_ref[...], preferred_element_type=jnp.float32)
    scale, shift = _bn_scale_shift(z, g1_ref[...], b1_ref[...], count, eps)
    y1_ref[...] = jnp.maximum(z * scale + shift, 0.0).astype(y1_ref.dtype)


def _stage1_proj_kernel(p1_ref, w1_ref, g1_ref, b1_ref,
                        ps_ref, ws_ref, gs_ref, bs_ref,
                        y1_ref, res_ref, *, count, eps):
    """Stage 1 plus the projection shortcut (1x1 conv + BN) fused in."""
    z = jnp.dot(p1_ref[...], w1_ref[...], preferred_element_type=jnp.float32)
    scale, shift = _bn_scale_shift(z, g1_ref[...], b1_ref[...], count, eps)
    y1_ref[...] = jnp.maximum(z * scale + shift, 0.0).astype(y1_ref.dtype)

    zs = jnp.dot(ps_ref[...], ws_ref[...], preferred_element_type=jnp.float32)
    ssc, tsc = _bn_scale_shift(zs, gs_ref[...], bs_ref[...], count, eps)
    res_ref[...] = (zs * ssc + tsc).astype(res_ref.dtype)


def _stage2_kernel(p2_ref, w2_ref, g2_ref, b2_ref, res_ref, out_ref, *, count, eps):
    """conv2 (im2col dot) + BN2 + residual add + final ReLU, all in VMEM."""
    z = jnp.dot(p2_ref[...], w2_ref[...], preferred_element_type=jnp.float32)
    scale, shift = _bn_scale_shift(z, g2_ref[...], b2_ref[...], count, eps)
    out_ref[...] = jnp.maximum(
        z * scale + shift + res_ref[...].astype(jnp.float32), 0.0
    ).astype(out_ref.dtype)


# --------------------------------- JAX glue --------------------------------- #

_VMEM_SPEC = pl.BlockSpec(memory_space=pltpu.MemorySpace.VMEM)
_CPARAMS = pltpu.CompilerParams(vmem_limit_bytes=_VMEM_LIMIT)


def _im2col(x_nhwc, ksize, stride, pad):
    """NHWC -> (N*Ho*Wo, ksize*ksize*C) rows; taps folded into contraction dim."""
    n, h, w, c = x_nhwc.shape
    xp = jnp.pad(x_nhwc, ((0, 0), (pad, pad), (pad, pad), (0, 0)))
    ho = (h + 2 * pad - ksize) // stride + 1
    wo = (w + 2 * pad - ksize) // stride + 1
    taps = []
    for kh in range(ksize):
        for kw in range(ksize):
            taps.append(jax.lax.slice(
                xp, (0, kh, kw, 0),
                (n, kh + stride * (ho - 1) + 1, kw + stride * (wo - 1) + 1, c),
                (1, stride, stride, 1)))
    p = jnp.stack(taps, axis=3)                       # (N, Ho, Wo, KK, C)
    return p.reshape(n * ho * wo, ksize * ksize * c), ho, wo


def _weight_to_mat(w):
    """PyTorch (Cout, Cin, kh, kw) -> (kh*kw*Cin, Cout) bf16, matching _im2col order."""
    cout, cin, kh, kw = w.shape
    return jnp.transpose(w, (2, 3, 1, 0)).reshape(kh * kw * cin, cout).astype(jnp.bfloat16)


def _bn_vec(v):
    return v.astype(jnp.float32).reshape(1, -1)


def _check_vmem(*arrays):
    total = sum(a.size * a.dtype.itemsize for a in arrays)
    if total > _VMEM_LIMIT // 2:       # leave headroom for f32 intermediates in-kernel
        raise ValueError(
            f"fused ResidualBlock kernel needs ~{total} operand bytes in VMEM; "
            "use a tiled multi-pass variant for activations this large.")


def residual_block_pallas(x_nchw, params, stride, eps=_EPS):
    x_nhwc = jnp.transpose(x_nchw, (0, 2, 3, 1))       # NCHW -> NHWC
    n, h, w, cin = x_nhwc.shape
    cout = params["w1"].shape[0]
    projection = (stride != 1 or cin != cout)
    x_bf = x_nhwc.astype(jnp.bfloat16)

    # ----- stage 1: conv1 + bn1 + relu (+ projection shortcut conv + bn) -----
    p1, ho, wo = _im2col(x_bf, 3, stride, 1)            # (R, 9*Cin) bf16
    rows = n * ho * wo
    count = float(rows)
    w1m = _weight_to_mat(params["w1"])
    g1, b1 = _bn_vec(params["g1"]), _bn_vec(params["b1"])

    if projection:
        psc, _, _ = _im2col(x_bf, 1, stride, 0)          # (R, Cin) bf16
        wsm = _weight_to_mat(params["w_sc"])
        gs, bs = _bn_vec(params["g_sc"]), _bn_vec(params["b_sc"])
        _check_vmem(p1, w1m, g1, b1, psc, wsm, gs, bs)
        y1, res = pl.pallas_call(
            functools.partial(_stage1_proj_kernel, count=count, eps=eps),
            out_shape=(jax.ShapeDtypeStruct((rows, cout), jnp.bfloat16),
                       jax.ShapeDtypeStruct((rows, cout), jnp.bfloat16)),
            in_specs=[_VMEM_SPEC] * 8,
            out_specs=(_VMEM_SPEC, _VMEM_SPEC),
            compiler_params=_CPARAMS,
        )(p1, w1m, g1, b1, psc, wsm, gs, bs)
    else:
        _check_vmem(p1, w1m, g1, b1)
        y1 = pl.pallas_call(
            functools.partial(_stage1_kernel, count=count, eps=eps),
            out_shape=jax.ShapeDtypeStruct((rows, cout), jnp.bfloat16),
            in_specs=[_VMEM_SPEC] * 4,
            out_specs=_VMEM_SPEC,
            compiler_params=_CPARAMS,
        )(p1, w1m, g1, b1)
        # identity shortcut: keep the residual in f32 for a more accurate add
        res = x_nhwc.reshape(rows, cout)

    # ----- stage 2: conv2 + bn2 + residual add + relu -----
    p2, _, _ = _im2col(y1.reshape(n, ho, wo, cout), 3, 1, 1)   # (R, 9*Cout) bf16
    w2m = _weight_to_mat(params["w2"])
    g2, b2 = _bn_vec(params["g2"]), _bn_vec(params["b2"])
    _check_vmem(p2, w2m, g2, b2, res)
    out = pl.pallas_call(
        functools.partial(_stage2_kernel, count=count, eps=eps),
        out_shape=jax.ShapeDtypeStruct((rows, cout), jnp.float32),
        in_specs=[_VMEM_SPEC] * 5,
        out_specs=_VMEM_SPEC,
        compiler_params=_CPARAMS,
    )(p2, w2m, g2, b2, res)

    out = out.reshape(n, ho, wo, cout)
    return jnp.transpose(out, (0, 3, 1, 2))             # NHWC -> NCHW


# --------------------------- pure-JAX reference ------------------------------ #

def _ref_conv(x, w, stride, pad):
    return jax.lax.conv_general_dilated(
        x, w, (stride, stride), [(pad, pad), (pad, pad)],
        dimension_numbers=("NCHW", "OIHW", "NCHW"),
        precision=jax.lax.Precision.HIGHEST)


def _ref_bn(x, g, b, eps=_EPS):
    mean = x.mean(axis=(0, 2, 3), keepdims=True)
    var = ((x - mean) ** 2).mean(axis=(0, 2, 3), keepdims=True)
    return ((x - mean) * jax.lax.rsqrt(var + eps) * g.reshape(1, -1, 1, 1)
            + b.reshape(1, -1, 1, 1))


def residual_block_ref(x, params, stride):
    cin, cout = x.shape[1], params["w1"].shape[0]
    out = jax.nn.relu(_ref_bn(_ref_conv(x, params["w1"], stride, 1),
                              params["g1"], params["b1"]))
    out = _ref_bn(_ref_conv(out, params["w2"], 1, 1), params["g2"], params["b2"])
    if stride != 1 or cin != cout:
        sc = _ref_bn(_ref_conv(x, params["w_sc"], stride, 0),
                     params["g_sc"], params["b_sc"])
    else:
        sc = x
    return jax.nn.relu(out + sc)


# ----------------------------------- main ------------------------------------ #

def _make_params(key, cin, cout, with_shortcut):
    ks = jax.random.split(key, 9)
    p = {
        "w1": 0.2 * jax.random.normal(ks[0], (cout, cin, 3, 3), jnp.float32),
        "g1": 1.0 + 0.1 * jax.random.normal(ks[1], (cout,), jnp.float32),
        "b1": 0.1 * jax.random.normal(ks[2], (cout,), jnp.float32),
        "w2": 0.2 * jax.random.normal(ks[3], (cout, cout, 3, 3), jnp.float32),
        "g2": 1.0 + 0.1 * jax.random.normal(ks[4], (cout,), jnp.float32),
        "b2": 0.1 * jax.random.normal(ks[5], (cout,), jnp.float32),
    }
    if with_shortcut:
        p.update({
            "w_sc": 0.2 * jax.random.normal(ks[6], (cout, cin, 1, 1), jnp.float32),
            "g_sc": 1.0 + 0.1 * jax.random.normal(ks[7], (cout,), jnp.float32),
            "b_sc": 0.1 * jax.random.normal(ks[8], (cout,), jnp.float32),
        })
    return p


if __name__ == "__main__":
    key = jax.random.PRNGKey(0)
    fwd = jax.jit(residual_block_pallas, static_argnames=("stride",))
    cases = [
        # (N, Cin, H, W, Cout, stride)
        (2, 4, 16, 16, 8, 2),   # projection shortcut (1x1 conv + BN)
        (2, 8, 16, 16, 8, 1),   # identity shortcut
    ]
    for idx, (n, cin, h, w, cout, stride) in enumerate(cases):
        kx, kp, key = jax.random.split(key, 3)
        x = jax.random.normal(kx, (n, cin, h, w), jnp.float32)
        params = _make_params(kp, cin, cout,
                              with_shortcut=(stride != 1 or cin != cout))

        out = jax.block_until_ready(fwd(x, params, stride=stride))
        ref = residual_block_ref(x, params, stride)

        ho, wo = h // stride, w // stride
        assert out.shape == ref.shape == (n, cout, ho, wo), out.shape
        max_err = float(jnp.max(jnp.abs(out - ref)))
        # bf16 MXU inputs + bf16 inter-stage intermediate vs. f32 HIGHEST-precision
        # reference -> loosened tolerance.
        assert jnp.allclose(out, ref, atol=1e-1, rtol=5e-2), \
            f"case {idx}: max_err={max_err}"

    print("KERNEL_OK")
</pallas_src>

<mosaic_0001>
module attributes {stable_mosaic.version = 11 : i64} {
  func.func @_stage1_proj_kernel(%arg0: memref<128x36xbf16, #tpu.memory_space<vmem>>, %arg1: memref<36x8xbf16, #tpu.memory_space<vmem>>, %arg2: memref<1x8xf32, #tpu.memory_space<vmem>>, %arg3: memref<1x8xf32, #tpu.memory_space<vmem>>, %arg4: memref<128x4xbf16, #tpu.memory_space<vmem>>, %arg5: memref<4x8xbf16, #tpu.memory_space<vmem>>, %arg6: memref<1x8xf32, #tpu.memory_space<vmem>>, %arg7: memref<1x8xf32, #tpu.memory_space<vmem>>, %arg8: memref<128x8xbf16, #tpu.memory_space<vmem>>, %arg9: memref<128x8xbf16, #tpu.memory_space<vmem>>) attributes {dimension_semantics = [], scalar_prefetch = 0 : i64, scratch_operands = 0 : i64, tpu.core_type = #tpu.core_type<tc>} {
    %c0 = arith.constant 0 : index
    %c0_0 = arith.constant 0 : index
    %0 = vector.load %arg0[%c0, %c0_0] : memref<128x36xbf16, #tpu.memory_space<vmem>>, vector<128x36xbf16>
    %c0_1 = arith.constant 0 : index
    %c0_2 = arith.constant 0 : index
    %1 = vector.load %arg1[%c0_1, %c0_2] : memref<36x8xbf16, #tpu.memory_space<vmem>>, vector<36x8xbf16>
    %cst = arith.constant dense<0.000000e+00> : vector<128x8xf32>
    %2 = tpu.matmul %0, %1, %cst {dimension_numbers = #tpu.dot_dimension_numbers<[1], [0], [0], [1], [0, 0, 1, 1], [], []>} : vector<128x36xbf16>, vector<36x8xbf16>, vector<128x8xf32> -> vector<128x8xf32>
    %c0_3 = arith.constant 0 : index
    %c0_4 = arith.constant 0 : index
    %3 = vector.load %arg2[%c0_3, %c0_4] : memref<1x8xf32, #tpu.memory_space<vmem>>, vector<1x8xf32>
    %c0_5 = arith.constant 0 : index
    %c0_6 = arith.constant 0 : index
    %4 = vector.load %arg3[%c0_5, %c0_6] : memref<1x8xf32, #tpu.memory_space<vmem>>, vector<1x8xf32>
    %cst_7 = arith.constant dense<0.000000e+00> : vector<8xf32>
    %5 = vector.multi_reduction <add>, %2, %cst_7 [0] : vector<128x8xf32> to vector<8xf32>
    %6 = vector.shape_cast %5 : vector<8xf32> to vector<1x8xf32>
    %7 = arith.mulf %2, %2 : vector<128x8xf32>
    %cst_8 = arith.constant dense<0.000000e+00> : vector<8xf32>
    %8 = vector.multi_reduction <add>, %7, %cst_8 [0] : vector<128x8xf32> to vector<8xf32>
    %9 = vector.shape_cast %8 : vector<8xf32> to vector<1x8xf32>
    %cst_9 = arith.constant 7.812500e-03 : f32
    %10 = vector.broadcast %cst_9 : f32 to vector<1x8xf32>
    %11 = arith.mulf %6, %10 : vector<1x8xf32>
    %cst_10 = arith.constant 7.812500e-03 : f32
    %12 = vector.broadcast %cst_10 : f32 to vector<1x8xf32>
    %13 = arith.mulf %9, %12 : vector<1x8xf32>
    %14 = arith.mulf %11, %11 : vector<1x8xf32>
    %15 = arith.subf %13, %14 : vector<1x8xf32>
    %cst_11 = arith.constant 0.000000e+00 : f32
    %16 = vector.broadcast %cst_11 : f32 to vector<1x8xf32>
    %17 = arith.maximumf %15, %16 : vector<1x8xf32>
    %cst_12 = arith.constant 9.99999974E-6 : f32
    %18 = vector.broadcast %cst_12 : f32 to vector<1x8xf32>
    %19 = arith.addf %17, %18 : vector<1x8xf32>
    %20 = math.rsqrt %19 : vector<1x8xf32>
    %21 = arith.mulf %3, %20 : vector<1x8xf32>
    %22 = arith.mulf %11, %21 : vector<1x8xf32>
    %23 = arith.subf %4, %22 : vector<1x8xf32>
    %24 = vector.broadcast %21 : vector<1x8xf32> to vector<128x8xf32>
    %25 = arith.mulf %2, %24 : vector<128x8xf32>
    %26 = vector.broadcast %23 : vector<1x8xf32> to vector<128x8xf32>
    %27 = arith.addf %25, %26 : vector<128x8xf32>
    %cst_13 = arith.constant 0.000000e+00 : f32
    %28 = vector.broadcast %cst_13 : f32 to vector<128x8xf32>
    %29 = arith.maximumf %27, %28 : vector<128x8xf32>
    %30 = arith.truncf %29 : vector<128x8xf32> to vector<128x8xbf16>
    %c0_14 = arith.constant 0 : index
    %c0_15 = arith.constant 0 : index
    %31 = vector.load %arg8[%c0_14, %c0_15] : memref<128x8xbf16, #tpu.memory_space<vmem>>, vector<128x8xbf16>
    tpu.vector_store %arg8[%c0_14, %c0_15], %30 {strides = array<i32>} : memref<128x8xbf16, #tpu.memory_space<vmem>>, vector<128x8xbf16>,
    %c0_16 = arith.constant 0 : index
    %c0_17 = arith.constant 0 : index
    %32 = vector.load %arg4[%c0_16, %c0_17] : memref<128x4xbf16, #tpu.memory_space<vmem>>, vector<128x4xbf16>
    %c0_18 = arith.constant 0 : index
    %c0_19 = arith.constant 0 : index
    %33 = vector.load %arg5[%c0_18, %c0_19] : memref<4x8xbf16, #tpu.memory_space<vmem>>, vector<4x8xbf16>
    %cst_20 = arith.constant dense<0.000000e+00> : vector<128x8xf32>
    %34 = tpu.matmul %32, %33, %cst_20 {dimension_numbers = #tpu.dot_dimension_numbers<[1], [0], [0], [1], [0, 0, 1, 1], [], []>} : vector<128x4xbf16>, vector<4x8xbf16>, vector<128x8xf32> -> vector<128x8xf32>
    %c0_21 = arith.constant 0 : index
    %c0_22 = arith.constant 0 : index
    %35 = vector.load %arg6[%c0_21, %c0_22] : memref<1x8xf32, #tpu.memory_space<vmem>>, vector<1x8xf32>
    %c0_23 = arith.constant 0 : index
    %c0_24 = arith.constant 0 : index
    %36 = vector.load %arg7[%c0_23, %c0_24] : memref<1x8xf32, #tpu.memory_space<vmem>>, vector<1x8xf32>
    %cst_25 = arith.constant dense<0.000000e+00> : vector<8xf32>
    %37 = vector.multi_reduction <add>, %34, %cst_25 [0] : vector<128x8xf32> to vector<8xf32>
    %38 = vector.shape_cast %37 : vector<8xf32> to vector<1x8xf32>
    %39 = arith.mulf %34, %34 : vector<128x8xf32>
    %cst_26 = arith.constant dense<0.000000e+00> : vector<8xf32>
    %40 = vector.multi_reduction <add>, %39, %cst_26 [0] : vector<128x8xf32> to vector<8xf32>
    %41 = vector.shape_cast %40 : vector<8xf32> to vector<1x8xf32>
    %cst_27 = arith.constant 7.812500e-03 : f32
    %42 = vector.broadcast %cst_27 : f32 to vector<1x8xf32>
    %43 = arith.mulf %38, %42 : vector<1x8xf32>
    %cst_28 = arith.constant 7.812500e-03 : f32
    %44 = vector.broadcast %cst_28 : f32 to vector<1x8xf32>
    %45 = arith.mulf %41, %44 : vector<1x8xf32>
    %46 = arith.mulf %43, %43 : vector<1x8xf32>
    %47 = arith.subf %45, %46 : vector<1x8xf32>
    %cst_29 = arith.constant 0.000000e+00 : f32
    %48 = vector.broadcast %cst_29 : f32 to vector<1x8xf32>
    %49 = arith.maximumf %47, %48 : vector<1x8xf32>
    %cst_30 = arith.constant 9.99999974E-6 : f32
    %50 = vector.broadcast %cst_30 : f32 to vector<1x8xf32>
    %51 = arith.addf %49, %50 : vector<1x8xf32>
    %52 = math.rsqrt %51 : vector<1x8xf32>
    %53 = arith.mulf %35, %52 : vector<1x8xf32>
    %54 = arith.mulf %43, %53 : vector<1x8xf32>
    %55 = arith.subf %36, %54 : vector<1x8xf32>
    %56 = vector.broadcast %53 : vector<1x8xf32> to vector<128x8xf32>
    %57 = arith.mulf %34, %56 : vector<128x8xf32>
    %58 = vector.broadcast %55 : vector<1x8xf32> to vector<128x8xf32>
    %59 = arith.addf %57, %58 : vector<128x8xf32>
    %60 = arith.truncf %59 : vector<128x8xf32> to vector<128x8xbf16>
    %c0_31 = arith.constant 0 : index
    %c0_32 = arith.constant 0 : index
    %61 = vector.load %arg9[%c0_31, %c0_32] : memref<128x8xbf16, #tpu.memory_space<vmem>>, vector<128x8xbf16>
    tpu.vector_store %arg9[%c0_31, %c0_32], %60 {strides = array<i32>} : memref<128x8xbf16, #tpu.memory_space<vmem>>, vector<128x8xbf16>,
    return
  }
}

module attributes {stable_mosaic.version = 11 : i64} {
  func.func @_stage2_kernel(%arg0: memref<128x72xbf16, #tpu.memory_space<vmem>>, %arg1: memref<72x8xbf16, #tpu.memory_space<vmem>>, %arg2: memref<1x8xf32, #tpu.memory_space<vmem>>, %arg3: memref<1x8xf32, #tpu.memory_space<vmem>>, %arg4: memref<128x8xbf16, #tpu.memory_space<vmem>>, %arg5: memref<128x8xf32, #tpu.memory_space<vmem>>) attributes {dimension_semantics = [], scalar_prefetch = 0 : i64, scratch_operands = 0 : i64, tpu.core_type = #tpu.core_type<tc>} {
    %c0 = arith.constant 0 : index
    %c0_0 = arith.constant 0 : index
    %0 = vector.load %arg0[%c0, %c0_0] : memref<128x72xbf16, #tpu.memory_space<vmem>>, vector<128x72xbf16>
    %c0_1 = arith.constant 0 : index
    %c0_2 = arith.constant 0 : index
    %1 = vector.load %arg1[%c0_1, %c0_2] : memref<72x8xbf16, #tpu.memory_space<vmem>>, vector<72x8xbf16>
    %cst = arith.constant dense<0.000000e+00> : vector<128x8xf32>
    %2 = tpu.matmul %0, %1, %cst {dimension_numbers = #tpu.dot_dimension_numbers<[1], [0], [0], [1], [0, 0, 1, 1], [], []>} : vector<128x72xbf16>, vector<72x8xbf16>, vector<128x8xf32> -> vector<128x8xf32>
    %c0_3 = arith.constant 0 : index
    %c0_4 = arith.constant 0 : index
    %3 = vector.load %arg2[%c0_3, %c0_4] : memref<1x8xf32, #tpu.memory_space<vmem>>, vector<1x8xf32>
    %c0_5 = arith.constant 0 : index
    %c0_6 = arith.constant 0 : index
    %4 = vector.load %arg3[%c0_5, %c0_6] : memref<1x8xf32, #tpu.memory_space<vmem>>, vector<1x8xf32>
    %cst_7 = arith.constant dense<0.000000e+00> : vector<8xf32>
    %5 = vector.multi_reduction <add>, %2, %cst_7 [0] : vector<128x8xf32> to vector<8xf32>
    %6 = vector.shape_cast %5 : vector<8xf32> to vector<1x8xf32>
    %7 = arith.mulf %2, %2 : vector<128x8xf32>
    %cst_8 = arith.constant dense<0.000000e+00> : vector<8xf32>
    %8 = vector.multi_reduction <add>, %7, %cst_8 [0] : vector<128x8xf32> to vector<8xf32>
    %9 = vector.shape_cast %8 : vector<8xf32> to vector<1x8xf32>
    %cst_9 = arith.constant 7.812500e-03 : f32
    %10 = vector.broadcast %cst_9 : f32 to vector<1x8xf32>
    %11 = arith.mulf %6, %10 : vector<1x8xf32>
    %cst_10 = arith.constant 7.812500e-03 : f32
    %12 = vector.broadcast %cst_10 : f32 to vector<1x8xf32>
    %13 = arith.mulf %9, %12 : vector<1x8xf32>
    %14 = arith.mulf %11, %11 : vector<1x8xf32>
    %15 = arith.subf %13, %14 : vector<1x8xf32>
    %cst_11 = arith.constant 0.000000e+00 : f32
    %16 = vector.broadcast %cst_11 : f32 to vector<1x8xf32>
    %17 = arith.maximumf %15, %16 : vector<1x8xf32>
    %cst_12 = arith.constant 9.99999974E-6 : f32
    %18 = vector.broadcast %cst_12 : f32 to vector<1x8xf32>
    %19 = arith.addf %17, %18 : vector<1x8xf32>
    %20 = math.rsqrt %19 : vector<1x8xf32>
    %21 = arith.mulf %3, %20 : vector<1x8xf32>
    %22 = arith.mulf %11, %21 : vector<1x8xf32>
    %23 = arith.subf %4, %22 : vector<1x8xf32>
    %24 = vector.broadcast %21 : vector<1x8xf32> to vector<128x8xf32>
    %25 = arith.mulf %2, %24 : vector<128x8xf32>
    %26 = vector.broadcast %23 : vector<1x8xf32> to vector<128x8xf32>
    %27 = arith.addf %25, %26 : vector<128x8xf32>
    %c0_13 = arith.constant 0 : index
    %c0_14 = arith.constant 0 : index
    %28 = vector.load %arg4[%c0_13, %c0_14] : memref<128x8xbf16, #tpu.memory_space<vmem>>, vector<128x8xbf16>
    %29 = arith.extf %28 : vector<128x8xbf16> to vector<128x8xf32>
    %30 = arith.addf %27, %29 : vector<128x8xf32>
    %cst_15 = arith.constant 0.000000e+00 : f32
    %31 = vector.broadcast %cst_15 : f32 to vector<128x8xf32>
    %32 = arith.maximumf %30, %31 : vector<128x8xf32>
    %c0_16 = arith.constant 0 : index
    %c0_17 = arith.constant 0 : index
    %33 = vector.load %arg5[%c0_16, %c0_17] : memref<128x8xf32, #tpu.memory_space<vmem>>, vector<128x8xf32>
    tpu.vector_store %arg5[%c0_16, %c0_17], %32 {strides = array<i32>} : memref<128x8xf32, #tpu.memory_space<vmem>>, vector<128x8xf32>,
    return
  }
}

</mosaic_0001>

<llo_original>
// kernel: residual_block_pallas.2
$region0: #{residual_block_pallas.2}
  #allocation0 [shape = 'u32[]', space=smem, size = 0x4, offset = 0x4, fixed_abs, tag = 'smem constant byte address 0x4 - core index']
  #allocation1 [shape = 'u32[72,128]{1,0:T(1,128)}', space=vmem, size = 0x9000, scoped, tag = 'internal scratch']
  %s0 = inlined_call_operand.vmem [shape: bf16[128,36], index: 0, kind: input, shape index: {}]
  %s1 = inlined_call_operand.vmem [shape: bf16[36,8], index: 1, kind: input, shape index: {}]
  %s2 = inlined_call_operand.vmem [shape: f32[1,8], index: 2, kind: input, shape index: {}]
  %s3 = inlined_call_operand.vmem [shape: f32[1,8], index: 3, kind: input, shape index: {}]
  %s4 = inlined_call_operand.vmem [shape: bf16[128,4], index: 4, kind: input, shape index: {}]
  %s5 = inlined_call_operand.vmem [shape: bf16[4,8], index: 5, kind: input, shape index: {}]
  %s6 = inlined_call_operand.vmem [shape: f32[1,8], index: 6, kind: input, shape index: {}]
  %s7 = inlined_call_operand.vmem [shape: f32[1,8], index: 7, kind: input, shape index: {}]
  %s8 = inlined_call_operand.vmem [shape: bf16[128,8], index: 8, kind: output, shape index: {0}]
  %s9 = inlined_call_operand.vmem [shape: bf16[128,8], index: 9, kind: output, shape index: {1}]
  %10 = xla_tuple %s8, %s9
  %s11 = sld [smem:[#allocation0]]
  $region50: #{residual_block_pallas.2} parent=0
    _
  %s13 = ssub.s32 1, %s11
  %s14 = scalar_select 0, %s13, %s11
  // Predicated region
  $region2: #{residual_block_pallas.2} parent=0 // pred_check
    _
  $region3: #{residual_block_pallas.2} parent=0 // pred_check_branch
    %16 = sbr.rel (0) target = $region5
  $region4: #{residual_block_pallas.2} parent=0 // pred_region
    _
  $region5: #{residual_block_pallas.2} parent=0 // pred_fallthru
    _
  // Predicated region
  $region6: #{residual_block_pallas.2} parent=0 // pred_check
    _
  $region7: #{residual_block_pallas.2} parent=0 // pred_check_branch
    %18 = sbr.rel (0) target = $region9
  $region8: #{residual_block_pallas.2} parent=0 // pred_region
    _
  $region9: #{residual_block_pallas.2} parent=0 // pred_fallthru
    _
  // Predicated region
  $region10: #{residual_block_pallas.2} parent=0 // pred_check
    _
  $region11: #{residual_block_pallas.2} parent=0 // pred_check_branch
    %20 = sbr.rel (0) target = $region13
  $region12: #{residual_block_pallas.2} parent=0 // pred_region
    _
  $region13: #{residual_block_pallas.2} parent=0 // pred_fallthru
    _
  // Predicated region
  $region14: #{residual_block_pallas.2} parent=0 // pred_check
    _
  $region15: #{residual_block_pallas.2} parent=0 // pred_check_branch
    %22 = sbr.rel (0) target = $region17
  $region16: #{residual_block_pallas.2} parent=0 // pred_region
    _
  $region17: #{residual_block_pallas.2} parent=0 // pred_fallthru
    _
  // Predicated region
  $region18: #{residual_block_pallas.2} parent=0 // pred_check
    _
  $region19: #{residual_block_pallas.2} parent=0 // pred_check_branch
    %24 = sbr.rel (0) target = $region21
  $region20: #{residual_block_pallas.2} parent=0 // pred_region
    _
  $region21: #{residual_block_pallas.2} parent=0 // pred_fallthru
    _
  // Predicated region
  $region22: #{residual_block_pallas.2} parent=0 // pred_check
    _
  $region23: #{residual_block_pallas.2} parent=0 // pred_check_branch
    %26 = sbr.rel (0) target = $region25
  $region24: #{residual_block_pallas.2} parent=0 // pred_region
    _
  $region25: #{residual_block_pallas.2} parent=0 // pred_fallthru
    _
  // Predicated region
  $region26: #{residual_block_pallas.2} parent=0 // pred_check
    _
  $region27: #{residual_block_pallas.2} parent=0 // pred_check_branch
    %28 = sbr.rel (0) target = $region29
  $region28: #{residual_block_pallas.2} parent=0 // pred_region
    _
  $region29: #{residual_block_pallas.2} parent=0 // pred_fallthru
    _
  // Predicated region
  $region30: #{residual_block_pallas.2} parent=0 // pred_check
    _
  $region31: #{residual_block_pallas.2} parent=0 // pred_check_branch
    %30 = sbr.rel (0) target = $region33
  $region32: #{residual_block_pallas.2} parent=0 // pred_region
    _
  $region33: #{residual_block_pallas.2} parent=0 // pred_fallthru
    _
  %v32 = vld [vmem:[%s0] sm:$0xf]
  %v33 = vld [vmem:[%s0 + $0x4] sm:$0xf]
  %v34 = vld [vmem:[%s0 + $0x8] sm:$0xf]
  %v35 = vld [vmem:[%s0 + $0xc] sm:$0xf]
  %v36 = vld [vmem:[%s0 + $0x10] sm:$0xf]
  %v37 = vld [vmem:[%s0 + $0x14] sm:$0xf]
  %v38 = vld [vmem:[%s0 + $0x18] sm:$0xf]
  %v39 = vld [vmem:[%s0 + $0x1c] sm:$0xf]
  %v40 = vld [vmem:[%s0 + $0x20] sm:$0xf]
  %v41 = vld [vmem:[%s0 + $0x24] sm:$0xf]
  %v42 = vld [vmem:[%s0 + $0x28] sm:$0xf]
  %v43 = vld [vmem:[%s0 + $0x2c] sm:$0xf]
  %v44 = vld [vmem:[%s0 + $0x30] sm:$0xf]
  %v45 = vld [vmem:[%s0 + $0x34] sm:$0xf]
  %v46 = vld [vmem:[%s0 + $0x38] sm:$0xf]
  %v47 = vld [vmem:[%s0 + $0x3c] sm:$0xf]
  %v48 = vld [vmem:[%s1] sm:$0xf]
  %v49 = vld [vmem:[%s1 + $0x4] sm:$0xf]
  %v50 = vld [vmem:[%s1 + $0x8] sm:$0xf]
  %v51 = vld [vmem:[%s1 + $0xc] sm:$0xf]
  %v52 = vld [vmem:[%s1 + $0x10] sm:$0x3]
  %v69 = vunpack.c.l.b16 %v32
  %v70 = vunpack.c.l.b16 %v33
  %v71 = vunpack.c.l.b16 %v34
  %v72 = vunpack.c.l.b16 %v35
  %v73 = vunpack.c.l.b16 %v36
  %v74 = vunpack.c.l.b16 %v37
  %v75 = vunpack.c.l.b16 %v38
  %v76 = vunpack.c.l.b16 %v39
  %v77 = vunpack.c.l.b16 %v40
  %v78 = vunpack.c.l.b16 %v41
  %v79 = vunpack.c.l.b16 %v42
  %v80 = vunpack.c.l.b16 %v43
  %v81 = vunpack.c.l.b16 %v44
  %v82 = vunpack.c.l.b16 %v45
  %v83 = vunpack.c.l.b16 %v46
  %v84 = vunpack.c.l.b16 %v47
  %v85 = vpack.c.b16 %v70, %v69
  %v86 = vpack.c.b16 %v72, %v71
  %v87 = vpack.c.b16 %v74, %v73
  %v88 = vpack.c.b16 %v76, %v75
  %v89 = vpack.c.b16 %v78, %v77
  %v90 = vpack.c.b16 %v80, %v79
  %v91 = vpack.c.b16 %v82, %v81
  %v92 = vpack.c.b16 %v84, %v83
  %v98 = vunpack.c.l.b16 %v48
  %v99 = vunpack.c.l.b16 %v49
  %v100 = vunpack.c.l.b16 %v50
  %v101 = vunpack.c.l.b16 %v51
  %v102 = vunpack.c.l.b16 %v52
  %v103 = vpack.c.b16 %v99, %v98
  %v104 = vpack.c.b16 %v101, %v100
  %v105 = vpack.c.b16 %v102, %v102
  %vm108 = vcmask 293888
  %v110 = vsel %vm108, %v85, 0
  %v113 = vsel %vm108, %v86, 0
  %v116 = vsel %vm108, %v87, 0
  %v119 = vsel %vm108, %v88, 0
  %v122 = vsel %vm108, %v89, 0
  %v125 = vsel %vm108, %v90, 0
  %v128 = vsel %vm108, %v91, 0
  %v131 = vsel %vm108, %v92, 0
  %vm133 = vcmask 1041408
  %v135 = vsel %vm133, %v105, 0
  %137 = vmatpush.bf16.msra.mxu0 0
  %138 = vmatpush.bf16.msra.mxu0 0
  %139 = vmatpush.bf16.msra.mxu0 0
  %140 = vmatpush.bf16.msra.mxu0 0
  %141 = vmatpush.bf16.msra.mxu0 0
  %142 = vmatpush.bf16.msra.mxu0 %v135
  %143 = vmatpush.bf16.msra.mxu0 %v104
  %144 = vmatpush.bf16.msra.mxu0 %v103
  %145 = vmatmul.bf16.gmra.mxu0 %v110
  %v146 = vpop.f32.mrf.mxu0
  %v147 = vadd.f32 0.0, %v146
  %v148 = vpop.f32.mrf.mxu0
  %v149 = vadd.f32 0.0, %v148
  %150 = vmatmul.bf16.gmra.mxu0 %v113
  %v151 = vpop.f32.mrf.mxu0
  %v152 = vadd.f32 0.0, %v151
  %v153 = vpop.f32.mrf.mxu0
  %v154 = vadd.f32 0.0, %v153
  %155 = vmatmul.bf16.gmra.mxu0 %v116
  %v156 = vpop.f32.mrf.mxu0
  %v157 = vadd.f32 0.0, %v156
  %v158 = vpop.f32.mrf.mxu0
  %v159 = vadd.f32 0.0, %v158
  %160 = vmatmul.bf16.gmra.mxu0 %v119
  %v161 = vpop.f32.mrf.mxu0
  %v162 = vadd.f32 0.0, %v161
  %v163 = vpop.f32.mrf.mxu0
  %v164 = vadd.f32 0.0, %v163
  %165 = vmatmul.bf16.gmra.mxu0 %v122
  %v166 = vpop.f32.mrf.mxu0
  %v167 = vadd.f32 0.0, %v166
  %v168 = vpop.f32.mrf.mxu0
  %v169 = vadd.f32 0.0, %v168
  %170 = vmatmul.bf16.gmra.mxu0 %v125
  %v171 = vpop.f32.mrf.mxu0
  %v172 = vadd.f32 0.0, %v171
  %v173 = vpop.f32.mrf.mxu0
  %v174 = vadd.f32 0.0, %v173
  %175 = vmatmul.bf16.gmra.mxu0 %v128
  %v176 = vpop.f32.mrf.mxu0
  %v177 = vadd.f32 0.0, %v176
  %v178 = vpop.f32.mrf.mxu0
  %v179 = vadd.f32 0.0, %v178
  %180 = vmatmul.bf16.gmra.mxu0 %v131
  %v181 = vpop.f32.mrf.mxu0
  %v182 = vadd.f32 0.0, %v181
  %v183 = vpop.f32.mrf.mxu0
  %v184 = vadd.f32 0.0, %v183
  %185 = vdwg.mxu0
  %v186 = vld [vmem:[%s2] sm:$0x1]
  %v187 = vld [vmem:[%s3] sm:$0x1]
  %vm188 = vcmask 64512
  %v189 = vsel %vm188, %v147, 0.0
  %v190 = vsel %vm188, %v149, 0.0
  %v191 = vadd.f32 %v189, %v190
  %v192 = vsel %vm188, %v152, 0.0
  %v193 = vadd.f32 %v191, %v192
  %v194 = vsel %vm188, %v154, 0.0
  %v195 = vadd.f32 %v193, %v194
  %v196 = vsel %vm188, %v157, 0.0
  %v197 = vadd.f32 %v195, %v196
  %v198 = vsel %vm188, %v159, 0.0
  %v199 = vadd.f32 %v197, %v198
  %v200 = vsel %vm188, %v162, 0.0
  %v201 = vadd.f32 %v199, %v200
  %v202 = vsel %vm188, %v164, 0.0
  %v203 = vadd.f32 %v201, %v202
  %v204 = vsel %vm188, %v167, 0.0
  %v205 = vadd.f32 %v203, %v204
  %v206 = vsel %vm188, %v169, 0.0
  %v207 = vadd.f32 %v205, %v206
  %v208 = vsel %vm188, %v172, 0.0
  %v209 = vadd.f32 %v207, %v208
  %v210 = vsel %vm188, %v174, 0.0
  %v211 = vadd.f32 %v209, %v210
  %v212 = vsel %vm188, %v177, 0.0
  %v213 = vadd.f32 %v211, %v212
  %v214 = vsel %vm188, %v179, 0.0
  %v215 = vadd.f32 %v213, %v214
  %v216 = vsel %vm188, %v182, 0.0
  %v217 = vadd.f32 %v215, %v216
  %v218 = vsel %vm188, %v184, 0.0
  %v219 = vadd.f32 %v217, %v218
  %v220 = vrot.slane %v219, 4
  %v221 = vadd.f32 %v219, %v220
  %v222 = vrot.slane %v221, 2
  %v223 = vadd.f32 %v221, %v222
  %v224 = vrot.slane %v223, 1
  %v225 = vadd.f32 %v223, %v224
  %v226 = vmul.f32 %v147, %v147
  %v227 = vmul.f32 %v149, %v149
  %v228 = vmul.f32 %v152, %v152
  %v229 = vmul.f32 %v154, %v154
  %v230 = vmul.f32 %v157, %v157
  %v231 = vmul.f32 %v159, %v159
  %v232 = vmul.f32 %v162, %v162
  %v233 = vmul.f32 %v164, %v164
  %v234 = vmul.f32 %v167, %v167
  %v235 = vmul.f32 %v169, %v169
  %v236 = vmul.f32 %v172, %v172
  %v237 = vmul.f32 %v174, %v174
  %v238 = vmul.f32 %v177, %v177
  %v239 = vmul.f32 %v179, %v179
  %v240 = vmul.f32 %v182, %v182
  %v241 = vmul.f32 %v184, %v184
  %v242 = vsel %vm188, %v226, 0.0
  %v243 = vsel %vm188, %v227, 0.0
  %v244 = vadd.f32 %v242, %v243
  %v245 = vsel %vm188, %v228, 0.0
  %v246 = vadd.f32 %v244, %v245
  %v247 = vsel %vm188, %v229, 0.0
  %v248 = vadd.f32 %v246, %v247
  %v249 = vsel %vm188, %v230, 0.0
  %v250 = vadd.f32 %v248, %v249
  %v251 = vsel %vm188, %v231, 0.0
  %v252 = vadd.f32 %v250, %v251
  %v253 = vsel %vm188, %v232, 0.0
  %v254 = vadd.f32 %v252, %v253
  %v255 = vsel %vm188, %v233, 0.0
  %v256 = vadd.f32 %v254, %v255
  %v257 = vsel %vm188, %v234, 0.0
  %v258 = vadd.f32 %v256, %v257
  %v259 = vsel %vm188, %v235, 0.0
  %v260 = vadd.f32 %v258, %v259
  %v261 = vsel %vm188, %v236, 0.0
  %v262 = vadd.f32 %v260, %v261
  %v263 = vsel %vm188, %v237, 0.0
  %v264 = vadd.f32 %v262, %v263
  %v265 = vsel %vm188, %v238, 0.0
  %v266 = vadd.f32 %v264, %v265
  %v267 = vsel %vm188, %v239, 0.0
  %v268 = vadd.f32 %v266, %v267
  %v269 = vsel %vm188, %v240, 0.0
  %v270 = vadd.f32 %v268, %v269
  %v271 = vsel %vm188, %v241, 0.0
  %v272 = vadd.f32 %v270, %v271
  %v273 = vrot.slane %v272, 4
  %v274 = vadd.f32 %v272, %v273
  %v275 = vrot.slane %v274, 2
  %v276 = vadd.f32 %v274, %v275
  %v277 = vrot.slane %v276, 1
  %v278 = vadd.f32 %v276, %v277
  %v279 = vmul.f32 %v225, 0.0078125
  %v280 = vmul.f32 %v278, 0.0078125
  %v281 = vmul.f32 %v279, %v279
  %v282 = vsub.f32 %v280, %v281
  %v283 = vmax.f32 %v282, 0.0
  %v284 = vadd.f32 %v283, 1e-05
  %v285 = vrsqrt.pop %v284
  %v286 = vmul.f32 %v285, %v284
  %v287 = vmul.f32 %v286, %v285
  %v288 = vmul.f32 0.5, %v287
  %v289 = vsub.f32 1.5, %v288
  %v290 = vmul.f32 %v285, %v289
  %vm291 = vweird.f32 %v284
  %vm292 = vweird.f32 %v285
  %vm293 = vmor %vm291, %vm292
  %v294 = vsel %vm293, %v285, %v290
  %v295 = vmul.f32 %v186, %v294
  %v296 = vmul.f32 %v279, %v295
  %v297 = vsub.f32 %v187, %v296
  %v299 = vperm.slane %v295, 0
  %v301 = vmul.f32 %v147, %v299
  %v302 = vmul.f32 %v149, %v299
  %v303 = vmul.f32 %v152, %v299
  %v304 = vmul.f32 %v154, %v299
  %v305 = vmul.f32 %v157, %v299
  %v306 = vmul.f32 %v159, %v299
  %v307 = vmul.f32 %v162, %v299
  %v308 = vmul.f32 %v164, %v299
  %v309 = vmul.f32 %v167, %v299
  %v310 = vmul.f32 %v169, %v299
  %v311 = vmul.f32 %v172, %v299
  %v312 = vmul.f32 %v174, %v299
  %v313 = vmul.f32 %v177, %v299
  %v314 = vmul.f32 %v179, %v299
  %v315 = vmul.f32 %v182, %v299
  %v316 = vmul.f32 %v184, %v299
  %v318 = vperm.slane %v297, 0
  %v320 = vadd.f32 %v301, %v318
  %v321 = vadd.f32 %v302, %v318
  %v322 = vadd.f32 %v303, %v318
  %v323 = vadd.f32 %v304, %v318
  %v324 = vadd.f32 %v305, %v318
  %v325 = vadd.f32 %v306, %v318
  %v326 = vadd.f32 %v307, %v318
  %v327 = vadd.f32 %v308, %v318
  %v328 = vadd.f32 %v309, %v318
  %v329 = vadd.f32 %v310, %v318
  %v330 = vadd.f32 %v311, %v318
  %v331 = vadd.f32 %v312, %v318
  %v332 = vadd.f32 %v313, %v318
  %v333 = vadd.f32 %v314, %v318
  %v334 = vadd.f32 %v315, %v318
  %v335 = vadd.f32 %v316, %v318
  %v336 = vmax.f32 %v320, 0.0
  %v337 = vmax.f32 %v321, 0.0
  %v338 = vmax.f32 %v322, 0.0
  %v339 = vmax.f32 %v323, 0.0
  %v340 = vmax.f32 %v324, 0.0
  %v341 = vmax.f32 %v325, 0.0
  %v342 = vmax.f32 %v326, 0.0
  %v343 = vmax.f32 %v327, 0.0
  %v344 = vmax.f32 %v328, 0.0
  %v345 = vmax.f32 %v329, 0.0
  %v346 = vmax.f32 %v330, 0.0
  %v347 = vmax.f32 %v331, 0.0
  %v348 = vmax.f32 %v332, 0.0
  %v349 = vmax.f32 %v333, 0.0
  %v350 = vmax.f32 %v334, 0.0
  %v351 = vmax.f32 %v335, 0.0
  %v352 = vpack.c.bf16 %v336, %v336
  %v353 = vpack.c.bf16 %v337, %v337
  %v354 = vpack.c.bf16 %v338, %v338
  %v355 = vpack.c.bf16 %v339, %v339
  %v356 = vpack.c.bf16 %v340, %v340
  %v357 = vpack.c.bf16 %v341, %v341
  %v358 = vpack.c.bf16 %v342, %v342
  %v359 = vpack.c.bf16 %v343, %v343
  %v360 = vpack.c.bf16 %v344, %v344
  %v361 = vpack.c.bf16 %v345, %v345
  %v362 = vpack.c.bf16 %v346, %v346
  %v363 = vpack.c.bf16 %v347, %v347
  %v364 = vpack.c.bf16 %v348, %v348
  %v365 = vpack.c.bf16 %v349, %v349
  %v366 = vpack.c.bf16 %v350, %v350
  %v367 = vpack.c.bf16 %v351, %v351
  %vm368 = vcmask 60416
  %369 = vst.msk [vmem:[%s8] sm:$0xf] %vm368, %v352
  %370 = vst.msk [vmem:[%s8 + $0x4] sm:$0xf] %vm368, %v353
  %371 = vst.msk [vmem:[%s8 + $0x8] sm:$0xf] %vm368, %v354
  %372 = vst.msk [vmem:[%s8 + $0xc] sm:$0xf] %vm368, %v355
  %373 = vst.msk [vmem:[%s8 + $0x10] sm:$0xf] %vm368, %v356
  %374 = vst.msk [vmem:[%s8 + $0x14] sm:$0xf] %vm368, %v357
  %375 = vst.msk [vmem:[%s8 + $0x18] sm:$0xf] %vm368, %v358
  %376 = vst.msk [vmem:[%s8 + $0x1c] sm:$0xf] %vm368, %v359
  %377 = vst.msk [vmem:[%s8 + $0x20] sm:$0xf] %vm368, %v360
  %378 = vst.msk [vmem:[%s8 + $0x24] sm:$0xf] %vm368, %v361
  %379 = vst.msk [vmem:[%s8 + $0x28] sm:$0xf] %vm368, %v362
  %380 = vst.msk [vmem:[%s8 + $0x2c] sm:$0xf] %vm368, %v363
  %381 = vst.msk [vmem:[%s8 + $0x30] sm:$0xf] %vm368, %v364
  %382 = vst.msk [vmem:[%s8 + $0x34] sm:$0xf] %vm368, %v365
  %383 = vst.msk [vmem:[%s8 + $0x38] sm:$0xf] %vm368, %v366
  %384 = vst.msk [vmem:[%s8 + $0x3c] sm:$0xf] %vm368, %v367
  %v385 = vld [vmem:[%s4] sm:$0xf]
  %v386 = vld [vmem:[%s4 + $0x4] sm:$0xf]
  %v387 = vld [vmem:[%s4 + $0x8] sm:$0xf]
  %v388 = vld [vmem:[%s4 + $0xc] sm:$0xf]
  %v389 = vld [vmem:[%s4 + $0x10] sm:$0xf]
  %v390 = vld [vmem:[%s4 + $0x14] sm:$0xf]
  %v391 = vld [vmem:[%s4 + $0x18] sm:$0xf]
  %v392 = vld [vmem:[%s4 + $0x1c] sm:$0xf]
  %v393 = vld [vmem:[%s4 + $0x20] sm:$0xf]
  %v394 = vld [vmem:[%s4 + $0x24] sm:$0xf]
  %v395 = vld [vmem:[%s4 + $0x28] sm:$0xf]
  %v396 = vld [vmem:[%s4 + $0x2c] sm:$0xf]
  %v397 = vld [vmem:[%s4 + $0x30] sm:$0xf]
  %v398 = vld [vmem:[%s4 + $0x34] sm:$0xf]
  %v399 = vld [vmem:[%s4 + $0x38] sm:$0xf]
  %v400 = vld [vmem:[%s4 + $0x3c] sm:$0xf]
  %v401 = vld [vmem:[%s5] sm:$0x3]
  %v418 = vunpack.c.l.b16 %v385
  %v419 = vunpack.c.l.b16 %v386
  %v420 = vunpack.c.l.b16 %v387
  %v421 = vunpack.c.l.b16 %v388
  %v422 = vunpack.c.l.b16 %v389
  %v423 = vunpack.c.l.b16 %v390
  %v424 = vunpack.c.l.b16 %v391
  %v425 = vunpack.c.l.b16 %v392
  %v426 = vunpack.c.l.b16 %v393
  %v427 = vunpack.c.l.b16 %v394
  %v428 = vunpack.c.l.b16 %v395
  %v429 = vunpack.c.l.b16 %v396
  %v430 = vunpack.c.l.b16 %v397
  %v431 = vunpack.c.l.b16 %v398
  %v432 = vunpack.c.l.b16 %v399
  %v433 = vunpack.c.l.b16 %v400
  %v434 = vpack.c.b16 %v419, %v418
  %v435 = vpack.c.b16 %v421, %v420
  %v436 = vpack.c.b16 %v423, %v422
  %v437 = vpack.c.b16 %v425, %v424
  %v438 = vpack.c.b16 %v427, %v426
  %v439 = vpack.c.b16 %v429, %v428
  %v440 = vpack.c.b16 %v431, %v430
  %v441 = vpack.c.b16 %v433, %v432
  %vm442 = vcmask 31744
  %v444 = vsel %vm442, %v434, 0
  %v447 = vsel %vm442, %v435, 0
  %v450 = vsel %vm442, %v436, 0
  %v453 = vsel %vm442, %v437, 0
  %v456 = vsel %vm442, %v438, 0
  %v459 = vsel %vm442, %v439, 0
  %v462 = vsel %vm442, %v440, 0
  %v465 = vsel %vm442, %v441, 0
  %v468 = vsel %vm133, %v401, 0
  %470 = vmatpush.bf16.msra.mxu0 0
  %471 = vmatpush.bf16.msra.mxu0 0
  %472 = vmatpush.bf16.msra.mxu0 0
  %473 = vmatpush.bf16.msra.mxu0 0
  %474 = vmatpush.bf16.msra.mxu0 0
  %475 = vmatpush.bf16.msra.mxu0 0
  %476 = vmatpush.bf16.msra.mxu0 0
  %477 = vmatpush.bf16.msra.mxu0 %v468
  %478 = vmatmul.bf16.gmra.mxu0 %v444
  %v479 = vpop.f32.mrf.mxu0
  %v480 = vadd.f32 0.0, %v479
  %v481 = vpop.f32.mrf.mxu0
  %v482 = vadd.f32 0.0, %v481
  %483 = vmatmul.bf16.gmra.mxu0 %v447
  %v484 = vpop.f32.mrf.mxu0
  %v485 = vadd.f32 0.0, %v484
  %v486 = vpop.f32.mrf.mxu0
  %v487 = vadd.f32 0.0, %v486
  %488 = vmatmul.bf16.gmra.mxu0 %v450
  %v489 = vpop.f32.mrf.mxu0
  %v490 = vadd.f32 0.0, %v489
  %v491 = vpop.f32.mrf.mxu0
  %v492 = vadd.f32 0.0, %v491
  %493 = vmatmul.bf16.gmra.mxu0 %v453
  %v494 = vpop.f32.mrf.mxu0
  %v495 = vadd.f32 0.0, %v494
  %v496 = vpop.f32.mrf.mxu0
  %v497 = vadd.f32 0.0, %v496
  %498 = vmatmul.bf16.gmra.mxu0 %v456
  %v499 = vpop.f32.mrf.mxu0
  %v500 = vadd.f32 0.0, %v499
  %v501 = vpop.f32.mrf.mxu0
  %v502 = vadd.f32 0.0, %v501
  %503 = vmatmul.bf16.gmra.mxu0 %v459
  %v504 = vpop.f32.mrf.mxu0
  %v505 = vadd.f32 0.0, %v504
  %v506 = vpop.f32.mrf.mxu0
  %v507 = vadd.f32 0.0, %v506
  %508 = vmatmul.bf16.gmra.mxu0 %v462
  %v509 = vpop.f32.mrf.mxu0
  %v510 = vadd.f32 0.0, %v509
  %v511 = vpop.f32.mrf.mxu0
  %v512 = vadd.f32 0.0, %v511
  %513 = vmatmul.bf16.gmra.mxu0 %v465
  %v514 = vpop.f32.mrf.mxu0
  %v515 = vadd.f32 0.0, %v514
  %v516 = vpop.f32.mrf.mxu0
  %v517 = vadd.f32 0.0, %v516
  %518 = vdwg.mxu0
  %v519 = vld [vmem:[%s6] sm:$0x1]
  %v520 = vld [vmem:[%s7] sm:$0x1]
  %v521 = vsel %vm188, %v480, 0.0
  %v522 = vsel %vm188, %v482, 0.0
  %v523 = vadd.f32 %v521, %v522
  %v524 = vsel %vm188, %v485, 0.0
  %v525 = vadd.f32 %v523, %v524
  %v526 = vsel %vm188, %v487, 0.0
  %v527 = vadd.f32 %v525, %v526
  %v528 = vsel %vm188, %v490, 0.0
  %v529 = vadd.f32 %v527, %v528
  %v530 = vsel %vm188, %v492, 0.0
  %v531 = vadd.f32 %v529, %v530
  %v532 = vsel %vm188, %v495, 0.0
  %v533 = vadd.f32 %v531, %v532
  %v534 = vsel %vm188, %v497, 0.0
  %v535 = vadd.f32 %v533, %v534
  %v536 = vsel %vm188, %v500, 0.0
  %v537 = vadd.f32 %v535, %v536
  %v538 = vsel %vm188, %v502, 0.0
  %v539 = vadd.f32 %v537, %v538
  %v540 = vsel %vm188, %v505, 0.0
  %v541 = vadd.f32 %v539, %v540
  %v542 = vsel %vm188, %v507, 0.0
  %v543 = vadd.f32 %v541, %v542
  %v544 = vsel %vm188, %v510, 0.0
  %v545 = vadd.f32 %v543, %v544
  %v546 = vsel %vm188, %v512, 0.0
  %v547 = vadd.f32 %v545, %v546
  %v548 = vsel %vm188, %v515, 0.0
  %v549 = vadd.f32 %v547, %v548
  %v550 = vsel %vm188, %v517, 0.0
  %v551 = vadd.f32 %v549, %v550
  %v552 = vrot.slane %v551, 4
  %v553 = vadd.f32 %v551, %v552
  %v554 = vrot.slane %v553, 2
  %v555 = vadd.f32 %v553, %v554
  %v556 = vrot.slane %v555, 1
  %v557 = vadd.f32 %v555, %v556
  %v558 = vmul.f32 %v480, %v480
  %v559 = vmul.f32 %v482, %v482
  %v560 = vmul.f32 %v485, %v485
  %v561 = vmul.f32 %v487, %v487
  %v562 = vmul.f32 %v490, %v490
  %v563 = vmul.f32 %v492, %v492
  %v564 = vmul.f32 %v495, %v495
  %v565 = vmul.f32 %v497, %v497
  %v566 = vmul.f32 %v500, %v500
  %v567 = vmul.f32 %v502, %v502
  %v568 = vmul.f32 %v505, %v505
  %v569 = vmul.f32 %v507, %v507
  %v570 = vmul.f32 %v510, %v510
  %v571 = vmul.f32 %v512, %v512
  %v572 = vmul.f32 %v515, %v515
  %v573 = vmul.f32 %v517, %v517
  %v574 = vsel %vm188, %v558, 0.0
  %v575 = vsel %vm188, %v559, 0.0
  %v576 = vadd.f32 %v574, %v575
  %v577 = vsel %vm188, %v560, 0.0
  %v578 = vadd.f32 %v576, %v577
  %v579 = vsel %vm188, %v561, 0.0
  %v580 = vadd.f32 %v578, %v579
  %v581 = vsel %vm188, %v562, 0.0
  %v582 = vadd.f32 %v580, %v581
  %v583 = vsel %vm188, %v563, 0.0
  %v584 = vadd.f32 %v582, %v583
  %v585 = vsel %vm188, %v564, 0.0
  %v586 = vadd.f32 %v584, %v585
  %v587 = vsel %vm188, %v565, 0.0
  %v588 = vadd.f32 %v586, %v587
  %v589 = vsel %vm188, %v566, 0.0
  %v590 = vadd.f32 %v588, %v589
  %v591 = vsel %vm188, %v567, 0.0
  %v592 = vadd.f32 %v590, %v591
  %v593 = vsel %vm188, %v568, 0.0
  %v594 = vadd.f32 %v592, %v593
  %v595 = vsel %vm188, %v569, 0.0
  %v596 = vadd.f32 %v594, %v595
  %v597 = vsel %vm188, %v570, 0.0
  %v598 = vadd.f32 %v596, %v597
  %v599 = vsel %vm188, %v571, 0.0
  %v600 = vadd.f32 %v598, %v599
  %v601 = vsel %vm188, %v572, 0.0
  %v602 = vadd.f32 %v600, %v601
  %v603 = vsel %vm188, %v573, 0.0
  %v604 = vadd.f32 %v602, %v603
  %v605 = vrot.slane %v604, 4
  %v606 = vadd.f32 %v604, %v605
  %v607 = vrot.slane %v606, 2
  %v608 = vadd.f32 %v606, %v607
  %v609 = vrot.slane %v608, 1
  %v610 = vadd.f32 %v608, %v609
  %v611 = vmul.f32 %v557, 0.0078125
  %v612 = vmul.f32 %v610, 0.0078125
  %v613 = vmul.f32 %v611, %v611
  %v614 = vsub.f32 %v612, %v613
  %v615 = vmax.f32 %v614, 0.0
  %v616 = vadd.f32 %v615, 1e-05
  %v617 = vrsqrt.pop %v616
  %v618 = vmul.f32 %v617, %v616
  %v619 = vmul.f32 %v618, %v617
  %v620 = vmul.f32 0.5, %v619
  %v621 = vsub.f32 1.5, %v620
  %v622 = vmul.f32 %v617, %v621
  %vm623 = vweird.f32 %v616
  %vm624 = vweird.f32 %v617
  %vm625 = vmor %vm623, %vm624
  %v626 = vsel %vm625, %v617, %v622
  %v627 = vmul.f32 %v519, %v626
  %v628 = vmul.f32 %v611, %v627
  %v629 = vsub.f32 %v520, %v628
  %v631 = vperm.slane %v627, 0
  %v633 = vmul.f32 %v480, %v631
  %v634 = vmul.f32 %v482, %v631
  %v635 = vmul.f32 %v485, %v631
  %v636 = vmul.f32 %v487, %v631
  %v637 = vmul.f32 %v490, %v631
  %v638 = vmul.f32 %v492, %v631
  %v639 = vmul.f32 %v495, %v631
  %v640 = vmul.f32 %v497, %v631
  %v641 = vmul.f32 %v500, %v631
  %v642 = vmul.f32 %v502, %v631
  %v643 = vmul.f32 %v505, %v631
  %v644 = vmul.f32 %v507, %v631
  %v645 = vmul.f32 %v510, %v631
  %v646 = vmul.f32 %v512, %v631
  %v647 = vmul.f32 %v515, %v631
  %v648 = vmul.f32 %v517, %v631
  %v650 = vperm.slane %v629, 0
  %v652 = vadd.f32 %v633, %v650
  %v653 = vadd.f32 %v634, %v650
  %v654 = vadd.f32 %v635, %v650
  %v655 = vadd.f32 %v636, %v650
  %v656 = vadd.f32 %v637, %v650
  %v657 = vadd.f32 %v638, %v650
  %v658 = vadd.f32 %v639, %v650
  %v659 = vadd.f32 %v640, %v650
  %v660 = vadd.f32 %v641, %v650
  %v661 = vadd.f32 %v642, %v650
  %v662 = vadd.f32 %v643, %v650
  %v663 = vadd.f32 %v644, %v650
  %v664 = vadd.f32 %v645, %v650
  %v665 = vadd.f32 %v646, %v650
  %v666 = vadd.f32 %v647, %v650
  %v667 = vadd.f32 %v648, %v650
  %v668 = vpack.c.bf16 %v652, %v652
  %v669 = vpack.c.bf16 %v653, %v653
  %v670 = vpack.c.bf16 %v654, %v654
  %v671 = vpack.c.bf16 %v655, %v655
  %v672 = vpack.c.bf16 %v656, %v656
  %v673 = vpack.c.bf16 %v657, %v657
  %v674 = vpack.c.bf16 %v658, %v658
  %v675 = vpack.c.bf16 %v659, %v659
  %v676 = vpack.c.bf16 %v660, %v660
  %v677 = vpack.c.bf16 %v661, %v661
  %v678 = vpack.c.bf16 %v662, %v662
  %v679 = vpack.c.bf16 %v663, %v663
  %v680 = vpack.c.bf16 %v664, %v664
  %v681 = vpack.c.bf16 %v665, %v665
  %v682 = vpack.c.bf16 %v666, %v666
  %v683 = vpack.c.bf16 %v667, %v667
  %684 = vst.msk [vmem:[%s9] sm:$0xf] %vm368, %v668
  %685 = vst.msk [vmem:[%s9 + $0x4] sm:$0xf] %vm368, %v669
  %686 = vst.msk [vmem:[%s9 + $0x8] sm:$0xf] %vm368, %v670
  %687 = vst.msk [vmem:[%s9 + $0xc] sm:$0xf] %vm368, %v671
  %688 = vst.msk [vmem:[%s9 + $0x10] sm:$0xf] %vm368, %v672
  %689 = vst.msk [vmem:[%s9 + $0x14] sm:$0xf] %vm368, %v673
  %690 = vst.msk [vmem:[%s9 + $0x18] sm:$0xf] %vm368, %v674
  %691 = vst.msk [vmem:[%s9 + $0x1c] sm:$0xf] %vm368, %v675
  %692 = vst.msk [vmem:[%s9 + $0x20] sm:$0xf] %vm368, %v676
  %693 = vst.msk [vmem:[%s9 + $0x24] sm:$0xf] %vm368, %v677
  %694 = vst.msk [vmem:[%s9 + $0x28] sm:$0xf] %vm368, %v678
  %695 = vst.msk [vmem:[%s9 + $0x2c] sm:$0xf] %vm368, %v679
  %696 = vst.msk [vmem:[%s9 + $0x30] sm:$0xf] %vm368, %v680
  %697 = vst.msk [vmem:[%s9 + $0x34] sm:$0xf] %vm368, %v681
  %698 = vst.msk [vmem:[%s9 + $0x38] sm:$0xf] %vm368, %v682
  %699 = vst.msk [vmem:[%s9 + $0x3c] sm:$0xf] %vm368, %v683
  // Predicated region
  $region34: #{residual_block_pallas.2} parent=0 // pred_check
    _
  $region35: #{residual_block_pallas.2} parent=0 // pred_check_branch
    %701 = sbr.rel (0) target = $region37
  $region36: #{residual_block_pallas.2} parent=0 // pred_region
    _
  $region37: #{residual_block_pallas.2} parent=0 // pred_fallthru
    _
  // Predicated region
  $region38: #{residual_block_pallas.2} parent=0 // pred_check
    _
  $region39: #{residual_block_pallas.2} parent=0 // pred_check_branch
    %703 = sbr.rel (0) target = $region41
  $region40: #{residual_block_pallas.2} parent=0 // pred_region
    _
  $region41: #{residual_block_pallas.2} parent=0 // pred_fallthru
    _
  // Predicated region
  $region42: #{residual_block_pallas.2} parent=0 // pred_check
    _
  $region43: #{residual_block_pallas.2} parent=0 // pred_check_branch
    %705 = sbr.rel (0) target = $region45
  $region44: #{residual_block_pallas.2} parent=0 // pred_region
    _
  $region45: #{residual_block_pallas.2} parent=0 // pred_fallthru
    _
  // Predicated region
  $region46: #{residual_block_pallas.2} parent=0 // pred_check
    _
  $region47: #{residual_block_pallas.2} parent=0 // pred_check_branch
    %707 = sbr.rel (0) target = $region49
  $region48: #{residual_block_pallas.2} parent=0 // pred_region
    _
  $region49: #{residual_block_pallas.2} parent=0 // pred_fallthru
    _

// kernel: residual_block_pallas.3
$region0: #{residual_block_pallas.3}
  #allocation0 [shape = 'u32[]', space=smem, size = 0x4, offset = 0x4, fixed_abs, tag = 'smem constant byte address 0x4 - core index']
  #allocation1 [shape = 'u32[72,128]{1,0:T(1,128)}', space=vmem, size = 0x9000, scoped, tag = 'internal scratch']
  %s0 = inlined_call_operand.vmem [shape: bf16[128,72], index: 0, kind: input, shape index: {}]
  %s1 = inlined_call_operand.vmem [shape: bf16[72,8], index: 1, kind: input, shape index: {}]
  %s2 = inlined_call_operand.vmem [shape: f32[1,8], index: 2, kind: input, shape index: {}]
  %s3 = inlined_call_operand.vmem [shape: f32[1,8], index: 3, kind: input, shape index: {}]
  %s4 = inlined_call_operand.vmem [shape: bf16[128,8], index: 4, kind: input, shape index: {}]
  %s5 = inlined_call_operand.vmem [shape: f32[128,8], index: 5, kind: output, shape index: {}]
  %s6 = sld [smem:[#allocation0]]
  $region30: #{residual_block_pallas.3} parent=0
    _
  %s8 = ssub.s32 1, %s6
  %s9 = scalar_select 0, %s8, %s6
  // Predicated region
  $region2: #{residual_block_pallas.3} parent=0 // pred_check
    _
  $region3: #{residual_block_pallas.3} parent=0 // pred_check_branch
    %11 = sbr.rel (0) target = $region5
  $region4: #{residual_block_pallas.3} parent=0 // pred_region
    _
  $region5: #{residual_block_pallas.3} parent=0 // pred_fallthru
    _
  // Predicated region
  $region6: #{residual_block_pallas.3} parent=0 // pred_check
    _
  $region7: #{residual_block_pallas.3} parent=0 // pred_check_branch
    %13 = sbr.rel (0) target = $region9
  $region8: #{residual_block_pallas.3} parent=0 // pred_region
    _
  $region9: #{residual_block_pallas.3} parent=0 // pred_fallthru
    _
  // Predicated region
  $region10: #{residual_block_pallas.3} parent=0 // pred_check
    _
  $region11: #{residual_block_pallas.3} parent=0 // pred_check_branch
    %15 = sbr.rel (0) target = $region13
  $region12: #{residual_block_pallas.3} parent=0 // pred_region
    _
  $region13: #{residual_block_pallas.3} parent=0 // pred_fallthru
    _
  // Predicated region
  $region14: #{residual_block_pallas.3} parent=0 // pred_check
    _
  $region15: #{residual_block_pallas.3} parent=0 // pred_check_branch
    %17 = sbr.rel (0) target = $region17
  $region16: #{residual_block_pallas.3} parent=0 // pred_region
    _
  $region17: #{residual_block_pallas.3} parent=0 // pred_fallthru
    _
  // Predicated region
  $region18: #{residual_block_pallas.3} parent=0 // pred_check
    _
  $region19: #{residual_block_pallas.3} parent=0 // pred_check_branch
    %19 = sbr.rel (0) target = $region21
  $region20: #{residual_block_pallas.3} parent=0 // pred_region
    _
  $region21: #{residual_block_pallas.3} parent=0 // pred_fallthru
    _
  %v21 = vld [vmem:[%s0] sm:$0xf]
  %v22 = vld [vmem:[%s0 + $0x4] sm:$0xf]
  %v23 = vld [vmem:[%s0 + $0x8] sm:$0xf]
  %v24 = vld [vmem:[%s0 + $0xc] sm:$0xf]
  %v25 = vld [vmem:[%s0 + $0x10] sm:$0xf]
  %v26 = vld [vmem:[%s0 + $0x14] sm:$0xf]
  %v27 = vld [vmem:[%s0 + $0x18] sm:$0xf]
  %v28 = vld [vmem:[%s0 + $0x1c] sm:$0xf]
  %v29 = vld [vmem:[%s0 + $0x20] sm:$0xf]
  %v30 = vld [vmem:[%s0 + $0x24] sm:$0xf]
  %v31 = vld [vmem:[%s0 + $0x28] sm:$0xf]
  %v32 = vld [vmem:[%s0 + $0x2c] sm:$0xf]
  %v33 = vld [vmem:[%s0 + $0x30] sm:$0xf]
  %v34 = vld [vmem:[%s0 + $0x34] sm:$0xf]
  %v35 = vld [vmem:[%s0 + $0x38] sm:$0xf]
  %v36 = vld [vmem:[%s0 + $0x3c] sm:$0xf]
  %v37 = vld [vmem:[%s1] sm:$0xf]
  %v38 = vld [vmem:[%s1 + $0x4] sm:$0xf]
  %v39 = vld [vmem:[%s1 + $0x8] sm:$0xf]
  %v40 = vld [vmem:[%s1 + $0xc] sm:$0xf]
  %v41 = vld [vmem:[%s1 + $0x10] sm:$0xf]
  %v42 = vld [vmem:[%s1 + $0x14] sm:$0xf]
  %v43 = vld [vmem:[%s1 + $0x18] sm:$0xf]
  %v44 = vld [vmem:[%s1 + $0x1c] sm:$0xf]
  %v45 = vld [vmem:[%s1 + $0x20] sm:$0xf]
  %v62 = vunpack.c.l.b16 %v21
  %v63 = vunpack.c.l.b16 %v22
  %v64 = vunpack.c.l.b16 %v23
  %v65 = vunpack.c.l.b16 %v24
  %v66 = vunpack.c.l.b16 %v25
  %v67 = vunpack.c.l.b16 %v26
  %v68 = vunpack.c.l.b16 %v27
  %v69 = vunpack.c.l.b16 %v28
  %v70 = vunpack.c.l.b16 %v29
  %v71 = vunpack.c.l.b16 %v30
  %v72 = vunpack.c.l.b16 %v31
  %v73 = vunpack.c.l.b16 %v32
  %v74 = vunpack.c.l.b16 %v33
  %v75 = vunpack.c.l.b16 %v34
  %v76 = vunpack.c.l.b16 %v35
  %v77 = vunpack.c.l.b16 %v36
  %v78 = vpack.c.b16 %v63, %v62
  %v79 = vpack.c.b16 %v65, %v64
  %v80 = vpack.c.b16 %v67, %v66
  %v81 = vpack.c.b16 %v69, %v68
  %v82 = vpack.c.b16 %v71, %v70
  %v83 = vpack.c.b16 %v73, %v72
  %v84 = vpack.c.b16 %v75, %v74
  %v85 = vpack.c.b16 %v77, %v76
  %v95 = vunpack.c.l.b16 %v37
  %v96 = vunpack.c.l.b16 %v38
  %v97 = vunpack.c.l.b16 %v39
  %v98 = vunpack.c.l.b16 %v40
  %v99 = vunpack.c.l.b16 %v41
  %v100 = vunpack.c.l.b16 %v42
  %v101 = vunpack.c.l.b16 %v43
  %v102 = vunpack.c.l.b16 %v44
  %v103 = vunpack.c.l.b16 %v45
  %v104 = vpack.c.b16 %v96, %v95
  %v105 = vpack.c.b16 %v98, %v97
  %v106 = vpack.c.b16 %v100, %v99
  %v107 = vpack.c.b16 %v102, %v101
  %v108 = vpack.c.b16 %v103, %v103
  %vm113 = vcmask 588800
  %v115 = vsel %vm113, %v78, 0
  %v118 = vsel %vm113, %v79, 0
  %v121 = vsel %vm113, %v80, 0
  %v124 = vsel %vm113, %v81, 0
  %v127 = vsel %vm113, %v82, 0
  %v130 = vsel %vm113, %v83, 0
  %v133 = vsel %vm113, %v84, 0
  %v136 = vsel %vm113, %v85, 0
  %vm138 = vcmask 1043456
  %v140 = vsel %vm138, %v108, 0
  %142 = vmatpush.bf16.msra.mxu0 0
  %143 = vmatpush.bf16.msra.mxu0 0
  %144 = vmatpush.bf16.msra.mxu0 0
  %145 = vmatpush.bf16.msra.mxu0 %v140
  %146 = vmatpush.bf16.msra.mxu0 %v107
  %147 = vmatpush.bf16.msra.mxu0 %v106
  %148 = vmatpush.bf16.msra.mxu0 %v105
  %149 = vmatpush.bf16.msra.mxu0 %v104
  %150 = vmatmul.bf16.gmra.mxu0 %v115
  %v151 = vpop.f32.mrf.mxu0
  %v152 = vadd.f32 0.0, %v151
  %v153 = vpop.f32.mrf.mxu0
  %v154 = vadd.f32 0.0, %v153
  %155 = vmatmul.bf16.gmra.mxu0 %v118
  %v156 = vpop.f32.mrf.mxu0
  %v157 = vadd.f32 0.0, %v156
  %v158 = vpop.f32.mrf.mxu0
  %v159 = vadd.f32 0.0, %v158
  %160 = vmatmul.bf16.gmra.mxu0 %v121
  %v161 = vpop.f32.mrf.mxu0
  %v162 = vadd.f32 0.0, %v161
  %v163 = vpop.f32.mrf.mxu0
  %v164 = vadd.f32 0.0, %v163
  %165 = vmatmul.bf16.gmra.mxu0 %v124
  %v166 = vpop.f32.mrf.mxu0
  %v167 = vadd.f32 0.0, %v166
  %v168 = vpop.f32.mrf.mxu0
  %v169 = vadd.f32 0.0, %v168
  %170 = vmatmul.bf16.gmra.mxu0 %v127
  %v171 = vpop.f32.mrf.mxu0
  %v172 = vadd.f32 0.0, %v171
  %v173 = vpop.f32.mrf.mxu0
  %v174 = vadd.f32 0.0, %v173
  %175 = vmatmul.bf16.gmra.mxu0 %v130
  %v176 = vpop.f32.mrf.mxu0
  %v177 = vadd.f32 0.0, %v176
  %v178 = vpop.f32.mrf.mxu0
  %v179 = vadd.f32 0.0, %v178
  %180 = vmatmul.bf16.gmra.mxu0 %v133
  %v181 = vpop.f32.mrf.mxu0
  %v182 = vadd.f32 0.0, %v181
  %v183 = vpop.f32.mrf.mxu0
  %v184 = vadd.f32 0.0, %v183
  %185 = vmatmul.bf16.gmra.mxu0 %v136
  %v186 = vpop.f32.mrf.mxu0
  %v187 = vadd.f32 0.0, %v186
  %v188 = vpop.f32.mrf.mxu0
  %v189 = vadd.f32 0.0, %v188
  %190 = vdwg.mxu0
  %v191 = vld [vmem:[%s2] sm:$0x1]
  %v192 = vld [vmem:[%s3] sm:$0x1]
  %vm193 = vcmask 64512
  %v194 = vsel %vm193, %v152, 0.0
  %v195 = vsel %vm193, %v154, 0.0
  %v196 = vadd.f32 %v194, %v195
  %v197 = vsel %vm193, %v157, 0.0
  %v198 = vadd.f32 %v196, %v197
  %v199 = vsel %vm193, %v159, 0.0
  %v200 = vadd.f32 %v198, %v199
  %v201 = vsel %vm193, %v162, 0.0
  %v202 = vadd.f32 %v200, %v201
  %v203 = vsel %vm193, %v164, 0.0
  %v204 = vadd.f32 %v202, %v203
  %v205 = vsel %vm193, %v167, 0.0
  %v206 = vadd.f32 %v204, %v205
  %v207 = vsel %vm193, %v169, 0.0
  %v208 = vadd.f32 %v206, %v207
  %v209 = vsel %vm193, %v172, 0.0
  %v210 = vadd.f32 %v208, %v209
  %v211 = vsel %vm193, %v174, 0.0
  %v212 = vadd.f32 %v210, %v211
  %v213 = vsel %vm193, %v177, 0.0
  %v214 = vadd.f32 %v212, %v213
  %v215 = vsel %vm193, %v179, 0.0
  %v216 = vadd.f32 %v214, %v215
  %v217 = vsel %vm193, %v182, 0.0
  %v218 = vadd.f32 %v216, %v217
  %v219 = vsel %vm193, %v184, 0.0
  %v220 = vadd.f32 %v218, %v219
  %v221 = vsel %vm193, %v187, 0.0
  %v222 = vadd.f32 %v220, %v221
  %v223 = vsel %vm193, %v189, 0.0
  %v224 = vadd.f32 %v222, %v223
  %v225 = vrot.slane %v224, 4
  %v226 = vadd.f32 %v224, %v225
  %v227 = vrot.slane %v226, 2
  %v228 = vadd.f32 %v226, %v227
  %v229 = vrot.slane %v228, 1
  %v230 = vadd.f32 %v228, %v229
  %v231 = vmul.f32 %v152, %v152
  %v232 = vmul.f32 %v154, %v154
  %v233 = vmul.f32 %v157, %v157
  %v234 = vmul.f32 %v159, %v159
  %v235 = vmul.f32 %v162, %v162
  %v236 = vmul.f32 %v164, %v164
  %v237 = vmul.f32 %v167, %v167
  %v238 = vmul.f32 %v169, %v169
  %v239 = vmul.f32 %v172, %v172
  %v240 = vmul.f32 %v174, %v174
  %v241 = vmul.f32 %v177, %v177
  %v242 = vmul.f32 %v179, %v179
  %v243 = vmul.f32 %v182, %v182
  %v244 = vmul.f32 %v184, %v184
  %v245 = vmul.f32 %v187, %v187
  %v246 = vmul.f32 %v189, %v189
  %v247 = vsel %vm193, %v231, 0.0
  %v248 = vsel %vm193, %v232, 0.0
  %v249 = vadd.f32 %v247, %v248
  %v250 = vsel %vm193, %v233, 0.0
  %v251 = vadd.f32 %v249, %v250
  %v252 = vsel %vm193, %v234, 0.0
  %v253 = vadd.f32 %v251, %v252
  %v254 = vsel %vm193, %v235, 0.0
  %v255 = vadd.f32 %v253, %v254
  %v256 = vsel %vm193, %v236, 0.0
  %v257 = vadd.f32 %v255, %v256
  %v258 = vsel %vm193, %v237, 0.0
  %v259 = vadd.f32 %v257, %v258
  %v260 = vsel %vm193, %v238, 0.0
  %v261 = vadd.f32 %v259, %v260
  %v262 = vsel %vm193, %v239, 0.0
  %v263 = vadd.f32 %v261, %v262
  %v264 = vsel %vm193, %v240, 0.0
  %v265 = vadd.f32 %v263, %v264
  %v266 = vsel %vm193, %v241, 0.0
  %v267 = vadd.f32 %v265, %v266
  %v268 = vsel %vm193, %v242, 0.0
  %v269 = vadd.f32 %v267, %v268
  %v270 = vsel %vm193, %v243, 0.0
  %v271 = vadd.f32 %v269, %v270
  %v272 = vsel %vm193, %v244, 0.0
  %v273 = vadd.f32 %v271, %v272
  %v274 = vsel %vm193, %v245, 0.0
  %v275 = vadd.f32 %v273, %v274
  %v276 = vsel %vm193, %v246, 0.0
  %v277 = vadd.f32 %v275, %v276
  %v278 = vrot.slane %v277, 4
  %v279 = vadd.f32 %v277, %v278
  %v280 = vrot.slane %v279, 2
  %v281 = vadd.f32 %v279, %v280
  %v282 = vrot.slane %v281, 1
  %v283 = vadd.f32 %v281, %v282
  %v284 = vmul.f32 %v230, 0.0078125
  %v285 = vmul.f32 %v283, 0.0078125
  %v286 = vmul.f32 %v284, %v284
  %v287 = vsub.f32 %v285, %v286
  %v288 = vmax.f32 %v287, 0.0
  %v289 = vadd.f32 %v288, 1e-05
  %v290 = vrsqrt.pop %v289
  %v291 = vmul.f32 %v290, %v289
  %v292 = vmul.f32 %v291, %v290
  %v293 = vmul.f32 0.5, %v292
  %v294 = vsub.f32 1.5, %v293
  %v295 = vmul.f32 %v290, %v294
  %vm296 = vweird.f32 %v289
  %vm297 = vweird.f32 %v290
  %vm298 = vmor %vm296, %vm297
  %v299 = vsel %vm298, %v290, %v295
  %v300 = vmul.f32 %v191, %v299
  %v301 = vmul.f32 %v284, %v300
  %v302 = vsub.f32 %v192, %v301
  %v304 = vperm.slane %v300, 0
  %v306 = vmul.f32 %v152, %v304
  %v307 = vmul.f32 %v154, %v304
  %v308 = vmul.f32 %v157, %v304
  %v309 = vmul.f32 %v159, %v304
  %v310 = vmul.f32 %v162, %v304
  %v311 = vmul.f32 %v164, %v304
  %v312 = vmul.f32 %v167, %v304
  %v313 = vmul.f32 %v169, %v304
  %v314 = vmul.f32 %v172, %v304
  %v315 = vmul.f32 %v174, %v304
  %v316 = vmul.f32 %v177, %v304
  %v317 = vmul.f32 %v179, %v304
  %v318 = vmul.f32 %v182, %v304
  %v319 = vmul.f32 %v184, %v304
  %v320 = vmul.f32 %v187, %v304
  %v321 = vmul.f32 %v189, %v304
  %v323 = vperm.slane %v302, 0
  %v325 = vadd.f32 %v306, %v323
  %v326 = vadd.f32 %v307, %v323
  %v327 = vadd.f32 %v308, %v323
  %v328 = vadd.f32 %v309, %v323
  %v329 = vadd.f32 %v310, %v323
  %v330 = vadd.f32 %v311, %v323
  %v331 = vadd.f32 %v312, %v323
  %v332 = vadd.f32 %v313, %v323
  %v333 = vadd.f32 %v314, %v323
  %v334 = vadd.f32 %v315, %v323
  %v335 = vadd.f32 %v316, %v323
  %v336 = vadd.f32 %v317, %v323
  %v337 = vadd.f32 %v318, %v323
  %v338 = vadd.f32 %v319, %v323
  %v339 = vadd.f32 %v320, %v323
  %v340 = vadd.f32 %v321, %v323
  %v341 = vld [vmem:[%s4] sm:$0xf]
  %v342 = vld [vmem:[%s4 + $0x4] sm:$0xf]
  %v343 = vld [vmem:[%s4 + $0x8] sm:$0xf]
  %v344 = vld [vmem:[%s4 + $0xc] sm:$0xf]
  %v345 = vld [vmem:[%s4 + $0x10] sm:$0xf]
  %v346 = vld [vmem:[%s4 + $0x14] sm:$0xf]
  %v347 = vld [vmem:[%s4 + $0x18] sm:$0xf]
  %v348 = vld [vmem:[%s4 + $0x1c] sm:$0xf]
  %v349 = vld [vmem:[%s4 + $0x20] sm:$0xf]
  %v350 = vld [vmem:[%s4 + $0x24] sm:$0xf]
  %v351 = vld [vmem:[%s4 + $0x28] sm:$0xf]
  %v352 = vld [vmem:[%s4 + $0x2c] sm:$0xf]
  %v353 = vld [vmem:[%s4 + $0x30] sm:$0xf]
  %v354 = vld [vmem:[%s4 + $0x34] sm:$0xf]
  %v355 = vld [vmem:[%s4 + $0x38] sm:$0xf]
  %v356 = vld [vmem:[%s4 + $0x3c] sm:$0xf]
  %v357 = vunpack.c.l.bf16 %v341
  %v358 = vunpack.c.l.bf16 %v342
  %v359 = vunpack.c.l.bf16 %v343
  %v360 = vunpack.c.l.bf16 %v344
  %v361 = vunpack.c.l.bf16 %v345
  %v362 = vunpack.c.l.bf16 %v346
  %v363 = vunpack.c.l.bf16 %v347
  %v364 = vunpack.c.l.bf16 %v348
  %v365 = vunpack.c.l.bf16 %v349
  %v366 = vunpack.c.l.bf16 %v350
  %v367 = vunpack.c.l.bf16 %v351
  %v368 = vunpack.c.l.bf16 %v352
  %v369 = vunpack.c.l.bf16 %v353
  %v370 = vunpack.c.l.bf16 %v354
  %v371 = vunpack.c.l.bf16 %v355
  %v372 = vunpack.c.l.bf16 %v356
  %v373 = vadd.f32 %v325, %v357
  %v374 = vadd.f32 %v326, %v358
  %v375 = vadd.f32 %v327, %v359
  %v376 = vadd.f32 %v328, %v360
  %v377 = vadd.f32 %v329, %v361
  %v378 = vadd.f32 %v330, %v362
  %v379 = vadd.f32 %v331, %v363
  %v380 = vadd.f32 %v332, %v364
  %v381 = vadd.f32 %v333, %v365
  %v382 = vadd.f32 %v334, %v366
  %v383 = vadd.f32 %v335, %v367
  %v384 = vadd.f32 %v336, %v368
  %v385 = vadd.f32 %v337, %v369
  %v386 = vadd.f32 %v338, %v370
  %v387 = vadd.f32 %v339, %v371
  %v388 = vadd.f32 %v340, %v372
  %v389 = vmax.f32 %v373, 0.0
  %v390 = vmax.f32 %v374, 0.0
  %v391 = vmax.f32 %v375, 0.0
  %v392 = vmax.f32 %v376, 0.0
  %v393 = vmax.f32 %v377, 0.0
  %v394 = vmax.f32 %v378, 0.0
  %v395 = vmax.f32 %v379, 0.0
  %v396 = vmax.f32 %v380, 0.0
  %v397 = vmax.f32 %v381, 0.0
  %v398 = vmax.f32 %v382, 0.0
  %v399 = vmax.f32 %v383, 0.0
  %v400 = vmax.f32 %v384, 0.0
  %v401 = vmax.f32 %v385, 0.0
  %v402 = vmax.f32 %v386, 0.0
  %v403 = vmax.f32 %v387, 0.0
  %v404 = vmax.f32 %v388, 0.0
  %405 = vst.msk [vmem:[%s5] sm:$0xff] %vm193, %v389
  %406 = vst.msk [vmem:[%s5 + $0x8] sm:$0xff] %vm193, %v390
  %407 = vst.msk [vmem:[%s5 + $0x10] sm:$0xff] %vm193, %v391
  %408 = vst.msk [vmem:[%s5 + $0x18] sm:$0xff] %vm193, %v392
  %409 = vst.msk [vmem:[%s5 + $0x20] sm:$0xff] %vm193, %v393
  %410 = vst.msk [vmem:[%s5 + $0x28] sm:$0xff] %vm193, %v394
  %411 = vst.msk [vmem:[%s5 + $0x30] sm:$0xff] %vm193, %v395
  %412 = vst.msk [vmem:[%s5 + $0x38] sm:$0xff] %vm193, %v396
  %413 = vst.msk [vmem:[%s5 + $0x40] sm:$0xff] %vm193, %v397
  %414 = vst.msk [vmem:[%s5 + $0x48] sm:$0xff] %vm193, %v398
  %415 = vst.msk [vmem:[%s5 + $0x50] sm:$0xff] %vm193, %v399
  %416 = vst.msk [vmem:[%s5 + $0x58] sm:$0xff] %vm193, %v400
  %417 = vst.msk [vmem:[%s5 + $0x60] sm:$0xff] %vm193, %v401
  %418 = vst.msk [vmem:[%s5 + $0x68] sm:$0xff] %vm193, %v402
  %419 = vst.msk [vmem:[%s5 + $0x70] sm:$0xff] %vm193, %v403
  %420 = vst.msk [vmem:[%s5 + $0x78] sm:$0xff] %vm193, %v404
  // Predicated region
  $region22: #{residual_block_pallas.3} parent=0 // pred_check
    _
  $region23: #{residual_block_pallas.3} parent=0 // pred_check_branch
    %422 = sbr.rel (0) target = $region25
  $region24: #{residual_block_pallas.3} parent=0 // pred_region
    _
  $region25: #{residual_block_pallas.3} parent=0 // pred_fallthru
    _
  // Predicated region
  $region26: #{residual_block_pallas.3} parent=0 // pred_check
    _
  $region27: #{residual_block_pallas.3} parent=0 // pred_check_branch
    %424 = sbr.rel (0) target = $region29
  $region28: #{residual_block_pallas.3} parent=0 // pred_region
    _
  $region29: #{residual_block_pallas.3} parent=0 // pred_fallthru
    _

</llo_original>
